<compile_context>
chip_gen: v5e
topology: v5e:2x2
jax: 0.10.0
libtpu: 0.0.40
codegen_flags: <defaults>
</compile_context>

<pallas_src>
import jax
import jax.numpy as jnp
from jax.experimental import pallas as pl
from jax.experimental.pallas import tpu as pltpu

INPUT_DIM = 1
OUTPUT_DIM = 1
LANES = 128            # TPU vreg lane width
# 4096-row f32 tiles = 2 MiB each; ~8 MiB total with default double buffering.
MAX_BLOCK_ROWS = 4096


def linreg_kernel(w_ref, b_ref, x_ref, o_ref):
    # w_ref / b_ref: (1,) f32 scalars in SMEM (kept f32; cast done in-kernel).
    # x_ref / o_ref: (block_rows, 128) tiles in VMEM.
    # Linear(1, 1) is a pure elementwise FMA on the VPU: out = x * w + b.
    w = w_ref[0]
    b = b_ref[0]
    x = x_ref[...].astype(jnp.float32)
    o_ref[...] = (x * w + b).astype(o_ref.dtype)


def _choose_block_rows(rows, max_block_rows):
    """Sublane-aligned block size; aim for >= 2 grid steps (v7x megacore)."""
    if rows <= 8:
        return rows                                   # single tiny block == full extent
    target = min(max_block_rows, pl.cdiv(rows, 2))    # at least 2 grid steps
    block_rows = pl.cdiv(target, 8) * 8               # multiple of 8 sublanes
    return min(block_rows, max_block_rows)


def linear_regression_forward(x, weight, bias, *, max_block_rows=MAX_BLOCK_ROWS):
    """Forward for nn.Linear(1, 1): out = x @ W.T + b.

    x: (N, 1); weight: (1, 1); bias: (1,) -> out: (N, 1).
    """
    n, in_dim = x.shape
    out_dim, k_dim = weight.shape
    assert in_dim == 1 and out_dim == 1 and k_dim == 1, (
        "This kernel specializes nn.Linear(1, 1) to a VPU FMA."
    )

    rows = pl.cdiv(n, LANES)
    padded_n = rows * LANES

    # Lane-dense layout: present x as a (rows, 128) slab.
    xf = x.reshape(-1)
    if padded_n == n:
        x_slab = xf.reshape(rows, LANES)              # fast path: free reshape, no copy
    else:
        # Ragged: pad only the <=127-element lane tail.
        x_slab = jnp.pad(xf, (0, padded_n - n)).reshape(rows, LANES)

    block_rows = _choose_block_rows(rows, max_block_rows)
    grid_rows = pl.cdiv(rows, block_rows)             # Pallas masks the partial last block

    w_s = weight.reshape(1).astype(jnp.float32)       # f32 scalar -> SMEM
    b_s = bias.reshape(1).astype(jnp.float32)         # f32 scalar -> SMEM

    out_slab = pl.pallas_call(
        linreg_kernel,
        out_shape=jax.ShapeDtypeStruct((rows, LANES), x.dtype),
        grid=(grid_rows,),
        in_specs=[
            pl.BlockSpec(memory_space=pltpu.MemorySpace.SMEM),    # weight scalar
            pl.BlockSpec(memory_space=pltpu.MemorySpace.SMEM),    # bias scalar
            pl.BlockSpec((block_rows, LANES), lambda i: (i, 0)),  # x tile
        ],
        out_specs=pl.BlockSpec((block_rows, LANES), lambda i: (i, 0)),
        compiler_params=pltpu.CompilerParams(
            dimension_semantics=("parallel",),   # megacore split on v7x; no-op on v5e/v6e
        ),
    )(w_s, b_s, x_slab)

    out_flat = out_slab.reshape(-1)
    if padded_n != n:
        out_flat = out_flat[:n]                       # drop lane-tail padding only
    return out_flat.reshape(n, out_dim)


if __name__ == "__main__":
    key = jax.random.PRNGKey(0)
    kx, kw, kb = jax.random.split(key, 3)

    # Small example: batch of 8 scalar features, matching nn.Linear(1, 1).
    x = jax.random.normal(kx, (8, INPUT_DIM), dtype=jnp.float32)

    # Mimic nn.Linear's uniform(-1/sqrt(fan_in), +1/sqrt(fan_in)) init.
    bound = 1.0 / (INPUT_DIM ** 0.5)
    weight = jax.random.uniform(
        kw, (OUTPUT_DIM, INPUT_DIM), dtype=jnp.float32, minval=-bound, maxval=bound
    )
    bias = jax.random.uniform(
        kb, (OUTPUT_DIM,), dtype=jnp.float32, minval=-bound, maxval=bound
    )

    out = jax.block_until_ready(linear_regression_forward(x, weight, bias))
    ref = x @ weight.T + bias[None, :]
    assert out.shape == (8, OUTPUT_DIM)
    assert jnp.allclose(out, ref, atol=1e-5, rtol=1e-5)

    # Also exercise the ragged multi-block path (partial final row block).
    x2 = jax.random.normal(kx, (1300, INPUT_DIM), dtype=jnp.float32)
    out2 = jax.block_until_ready(linear_regression_forward(x2, weight, bias))
    ref2 = x2 @ weight.T + bias[None, :]
    assert out2.shape == (1300, OUTPUT_DIM)
    assert jnp.allclose(out2, ref2, atol=1e-5, rtol=1e-5)

    print("KERNEL_OK")
</pallas_src>

<mosaic_0001>
module attributes {stable_mosaic.version = 11 : i64} {
  func.func @linreg_kernel(%arg0: i32, %arg1: memref<1xf32, #tpu.memory_space<smem>>, %arg2: memref<1xf32, #tpu.memory_space<smem>>, %arg3: memref<1x128xf32, #tpu.memory_space<vmem>>, %arg4: memref<1x128xf32, #tpu.memory_space<vmem>>) attributes {dimension_semantics = [#tpu.dimension_semantics<parallel>], iteration_bounds = array<i64: 1>, scalar_prefetch = 0 : i64, scratch_operands = 0 : i64, tpu.core_type = #tpu.core_type<tc>, window_params = [{transform_indices = @transform_0, window_bounds = array<i64: 1>}, {transform_indices = @transform_1, window_bounds = array<i64: 1>}, {transform_indices = @transform_2, window_bounds = array<i64: 1, 128>}, {transform_indices = @transform_3, window_bounds = array<i64: 1, 128>}]} {
    %c0 = arith.constant 0 : index
    %0 = memref.load %arg1[%c0] : memref<1xf32, #tpu.memory_space<smem>>
    %c0_0 = arith.constant 0 : index
    %1 = memref.load %arg2[%c0_0] : memref<1xf32, #tpu.memory_space<smem>>
    %c0_1 = arith.constant 0 : index
    %c0_2 = arith.constant 0 : index
    %2 = vector.load %arg3[%c0_1, %c0_2] : memref<1x128xf32, #tpu.memory_space<vmem>>, vector<1x128xf32>
    %3 = vector.broadcast %0 : f32 to vector<1x128xf32>
    %4 = arith.mulf %2, %3 : vector<1x128xf32>
    %5 = vector.broadcast %1 : f32 to vector<1x128xf32>
    %6 = arith.addf %4, %5 : vector<1x128xf32>
    %c0_3 = arith.constant 0 : index
    %c0_4 = arith.constant 0 : index
    %7 = vector.load %arg4[%c0_3, %c0_4] : memref<1x128xf32, #tpu.memory_space<vmem>>, vector<1x128xf32>
    tpu.vector_store %arg4[%c0_3, %c0_4], %6 {strides = array<i32>} : memref<1x128xf32, #tpu.memory_space<vmem>>, vector<1x128xf32>,
    return
  }
  func.func @transform_0(%arg0: i32) -> i32 {
    %c0_i32 = arith.constant 0 : i32
    %c0_i32_0 = arith.constant 0 : i32
    return %c0_i32 : i32
  }
  func.func @transform_1(%arg0: i32) -> i32 {
    %c0_i32 = arith.constant 0 : i32
    %c0_i32_0 = arith.constant 0 : i32
    return %c0_i32 : i32
  }
  func.func @transform_2(%arg0: i32) -> (i32, i32) {
    %c0_i32 = arith.constant 0 : i32
    %c0_i32_0 = arith.constant 0 : i32
    return %arg0, %c0_i32 : i32, i32
  }
  func.func @transform_3(%arg0: i32) -> (i32, i32) {
    %c0_i32 = arith.constant 0 : i32
    %c0_i32_0 = arith.constant 0 : i32
    return %arg0, %c0_i32 : i32, i32
  }
}

</mosaic_0001>

<llo_original>
// kernel: tpu_custom_call.1
$region0: #{tpu_custom_call.1}
  #allocation0 [shape = 'u32[]', space=smem, size = 0x4, offset = 0x4, fixed_abs, tag = 'smem constant byte address 0x4 - core index']
  #allocation1 [shape = 'u32[72,128]{1,0:T(1,128)}', space=vmem, size = 0x9000, scoped, tag = 'internal scratch']
  #allocation2 [shape = 'f32[1]{0:T(128)S(6)}', space=smem, size = 0x200, scoped, tag = 'scoped memory for tpu_custom_call.1']
  #allocation3 [shape = 'f32[1]{0:T(128)S(6)}', space=smem, size = 0x200, scoped, tag = 'scoped memory for tpu_custom_call.1']
  %s0 = inlined_call_operand.<no memory space> [shape: f32[1], index: 0, kind: input, shape index: {}]
  %s1 = inlined_call_operand.<no memory space> [shape: f32[1], index: 1, kind: input, shape index: {}]
  %s2 = inlined_call_operand.vmem [shape: f32[1,128], index: 2, kind: input, shape index: {}]
  %s3 = inlined_call_operand.hbm [shape: f32[1,128], index: 3, kind: output, shape index: {}]
  %s4 = sld [smem:[#allocation0]]
  $region22: #{tpu_custom_call.1} parent=0
    _
  %s6 = ssub.s32 1, %s4
  %s7 = scalar_select 0, %s6, %s4
  %8 = sst [smem:[#allocation2]] %s0
  %9 = sst [smem:[#allocation3]] %s1
  $region1: #{tpu_custom_call.1} parent=0
    #allocation4 [shape = 'u8[512]{0}', space=vmem, size = 0x400, scoped, tag = 'output window, operand 0, single buffered']
    #allocation5 [shape = 's32[1]{0}', space=sflag, size = 0x4, scoped, tag = 'scoped memory for tpu_custom_call.1']
    %10 = vsyncpa [#allocation5], 0
    // Predicated region
    $region2: #{tpu_custom_call.1} parent=1 // pred_check
      _
    $region3: #{tpu_custom_call.1} parent=1 // pred_check_branch
      %12 = sbr.rel (0) target = $region5
    $region4: #{tpu_custom_call.1} parent=1 // pred_region
      _
    $region5: #{tpu_custom_call.1} parent=1 // pred_fallthru
      _
    // Predicated region
    $region6: #{tpu_custom_call.1} parent=1 // pred_check
      _
    $region7: #{tpu_custom_call.1} parent=1 // pred_check_branch
      %14 = sbr.rel (0) target = $region9
    $region8: #{tpu_custom_call.1} parent=1 // pred_region
      _
    $region9: #{tpu_custom_call.1} parent=1 // pred_fallthru
      _
    // Predicated region
    $region10: #{tpu_custom_call.1} parent=1 // pred_check
      _
    $region11: #{tpu_custom_call.1} parent=1 // pred_check_branch
      %16 = sbr.rel (0) target = $region13
    $region12: #{tpu_custom_call.1} parent=1 // pred_region
      _
    $region13: #{tpu_custom_call.1} parent=1 // pred_fallthru
      _
    %s17 = sld [smem:[#allocation2]]
    %s18 = sld [smem:[#allocation3]]
    %v19 = vld [vmem:[%s2] sm:$0x1]
    %v20 = vstv %s17
    %v21 = vmul.f32 %v19, %v20
    %v22 = vstv %s18
    %v23 = vadd.f32 %v21, %v22
    %24 = vst [vmem:[#allocation4] sm:$0x1] %v23
    // Predicated region
    $region14: #{tpu_custom_call.1} parent=1 // pred_check
      _
    $region15: #{tpu_custom_call.1} parent=1 // pred_check_branch
      %26 = sbr.rel (0) target = $region17
    $region16: #{tpu_custom_call.1} parent=1 // pred_region
      %28 = vsyncadd [#allocation5], 0
      %s30 = sshll.u32 [#allocation4], 4
      %s31 = int_to_ptr.vmem [resolvable:$true] %s30
      %s32 = sshll.u32 %s3, 4
      %s33 = int_to_ptr.hbm [resolvable:$true] %s32
      %35 = dma.vmem_to_hbm [thread:$0]  %s31, 16, %s33, [#allocation5]
    $region17: #{tpu_custom_call.1} parent=1 // pred_fallthru
      _
    // Predicated region
    $region18: #{tpu_custom_call.1} parent=1 // pred_check
      _
    $region19: #{tpu_custom_call.1} parent=1 // pred_check_branch
      %37 = sbr.rel (0) target = $region21
    $region20: #{tpu_custom_call.1} parent=1 // pred_region
      %39 = dma.done [#allocation5], 16
    $region21: #{tpu_custom_call.1} parent=1 // pred_fallthru
      _
    %40 = vsyncpa [#allocation5], 1

</llo_original>
